<compile_context>
chip_gen: v7x
topology: tpu7x:2x2x1
jax: 0.10.0
libtpu: 0.0.40
codegen_flags: <defaults>
</compile_context>

<pallas_src>
import numpy as np

import jax
import jax.numpy as jnp
from jax import lax
from jax.experimental import pallas as pl
from jax.experimental.pallas import tpu as pltpu


# --------------------------------------------------------------------------- #
# Helpers
# --------------------------------------------------------------------------- #
def _vmem_capacity_bytes():
    try:
        return int(pltpu.get_tpu_info().vmem_capacity_bytes)
    except Exception:
        return 64 * 1024 * 1024          # conservative (v7x-sized) fallback


def _divisors(n):
    return [d for d in range(1, n + 1) if n % d == 0]


def _sublane_req(itemsize):
    return {4: 8, 2: 16, 1: 32}.get(int(itemsize), 8)


# --------------------------------------------------------------------------- #
# Fused InteractionMatrix forward
# --------------------------------------------------------------------------- #
def interaction_matrix(a_embed, b_embed, a_tok, b_tok, padding=-1,
                       out_dtype=None, batch_block=None, a_block=None,
                       approx_reciprocal=False):
    """JAX/Pallas equivalent of InteractionMatrix.forward.

    Returns (BAT, n_simmats, A, B), matching torch.stack(simmats, dim=1).
    """
    wrap = lambda x: list(x) if isinstance(x, (list, tuple)) else [x]
    a_embed = wrap(a_embed)
    b_embed = wrap(b_embed)
    assert len(a_embed) == len(b_embed)
    n_ch = len(a_embed)

    BAT, A = a_tok.shape
    B = b_tok.shape[1]
    BP = ((B + 127) // 128) * 128                    # lane-dense output width

    # ---------------- unique input streams (dedup by object identity) ------ #
    prepared, kinds, reg = [], [], {}

    def _register(key, kind, build):
        if key in reg:
            return reg[key]
        idx = len(prepared)
        reg[key] = idx
        prepared.append(build())
        kinds.append(kind)
        return idx

    def _prep_a_ids(x):
        return x.reshape(BAT, A, 1).astype(jnp.int32)

    def _prep_b_ids(x):
        x = x.reshape(BAT, 1, B).astype(jnp.int32)
        if BP != B:
            x = jnp.pad(x, ((0, 0), (0, 0), (0, BP - B)),
                        constant_values=padding)     # padded cols -> padding id
        return x

    def _prep_b_emb(x):
        if BP != B:
            x = jnp.pad(x, ((0, 0), (0, BP - B), (0, 0)))   # zero rows
        return x

    atok_idx = _register((id(a_tok), "aids"), "aids", lambda: _prep_a_ids(a_tok))
    btok_idx = _register((id(b_tok), "bids"), "bids", lambda: _prep_b_ids(b_tok))

    channels = []   # (kind, a_idx, b_idx, matmul_dtype)
    for a_e, b_e in zip(a_embed, b_embed):
        is_bin = (jnp.issubdtype(a_e.dtype, jnp.integer) and a_e.ndim == 2 and
                  jnp.issubdtype(b_e.dtype, jnp.integer) and b_e.ndim == 2)
        if is_bin:
            ai = _register((id(a_e), "aids"), "aids",
                           lambda a_e=a_e: _prep_a_ids(a_e))
            bi = _register((id(b_e), "bids"), "bids",
                           lambda b_e=b_e: _prep_b_ids(b_e))
            channels.append(("bin", ai, bi, None))
        else:
            ai = _register((id(a_e), "aemb"), "aemb", lambda a_e=a_e: a_e)
            bi = _register((id(b_e), "bemb"), "bemb",
                           lambda b_e=b_e: _prep_b_emb(b_e))
            mdt = (jnp.bfloat16
                   if (a_e.dtype == jnp.bfloat16 and b_e.dtype == jnp.bfloat16)
                   else jnp.float32)
            channels.append(("cos", ai, bi, mdt))

    # ---------------- output dtype ----------------------------------------- #
    cos_chs = [c for c in channels if c[0] == "cos"]
    if out_dtype is None:
        out_dtype = (jnp.bfloat16
                     if cos_chs and all(c[3] == jnp.bfloat16 for c in cos_chs)
                     else jnp.float32)
    out_itemsize = np.dtype(out_dtype).itemsize

    # ---------------- tiling constraints / block sizing -------------------- #
    sub_req = _sublane_req(out_itemsize)
    for kind, ai, _, _ in channels:
        if kind == "cos":
            sub_req = max(sub_req,
                          _sublane_req(np.dtype(prepared[ai].dtype).itemsize))

    def _step_bytes(bb_, ta_):
        in_b = 0
        for kind, arr in zip(kinds, prepared):
            itm = np.dtype(arr.dtype).itemsize
            if kind == "aemb":
                in_b += bb_ * ta_ * arr.shape[-1] * itm
            elif kind == "bemb":
                in_b += bb_ * BP * arr.shape[-1] * itm
            elif kind == "aids":
                in_b += bb_ * ta_ * 4
            else:                                     # bids
                in_b += bb_ * BP * 4
        out_b = bb_ * n_ch * ta_ * BP * out_itemsize
        # rough f32 in-kernel temporaries (normalized operands + sim) per cos
        tmp = 0
        for kind, ai, bi, _ in channels:
            if kind == "cos":
                tmp += bb_ * (ta_ * prepared[ai].shape[-1]
                              + BP * prepared[bi].shape[-1]
                              + ta_ * BP) * 4
        return 2 * (in_b + out_b) + tmp, out_b

    cap = _vmem_capacity_bytes()
    budget = int(cap * 0.40)                          # generation-aware budget

    ta_opts = sorted({A} | {t for t in _divisors(A) if t % sub_req == 0})
    bb_opts = _divisors(BAT)

    if batch_block is not None or a_block is not None:
        bb = batch_block if batch_block is not None else BAT
        ta = a_block if a_block is not None else A
    else:
        feasible = []
        for bb_c in bb_opts:
            for ta_c in ta_opts:
                need, out_b = _step_bytes(bb_c, ta_c)
                if need <= budget:
                    feasible.append((bb_c, ta_c, need, out_b))
        if not feasible:
            bb, ta = 1, min(ta_opts)                  # best effort
        else:
            # prefer >=2 grid steps (megacore) only while each step still
            # carries >= 1 MiB of output; otherwise take the biggest step.
            pref = [f for f in feasible
                    if (BAT // f[0]) * (A // f[1]) >= 2 and f[3] >= (1 << 20)]
            pool = pref if pref else feasible
            bb, ta, _, _ = max(pool, key=lambda f: f[2])
    assert BAT % bb == 0 and A % ta == 0, (BAT, bb, A, ta)
    assert ta == A or ta % sub_req == 0, (ta, sub_req)

    need, _ = _step_bytes(bb, ta)
    vmem_limit = int(min(cap * 3 // 4, max(need + (4 << 20), 32 << 20)))

    # ---------------- BlockSpecs ------------------------------------------- #
    def _spec(kind, arr):
        if kind == "aemb":
            return pl.BlockSpec((bb, ta, arr.shape[-1]), lambda i, j: (i, j, 0))
        if kind == "bemb":
            return pl.BlockSpec((bb, BP, arr.shape[-1]), lambda i, j: (i, 0, 0))
        if kind == "aids":
            return pl.BlockSpec((bb, ta, 1), lambda i, j: (i, j, 0))
        return pl.BlockSpec((bb, 1, BP), lambda i, j: (i, 0, 0))      # bids

    in_specs = [_spec(k, arr) for k, arr in zip(kinds, prepared)]
    out_spec = pl.BlockSpec((bb, n_ch, ta, BP), lambda i, j: (i, 0, j, 0))
    out_shape = jax.ShapeDtypeStruct((BAT, n_ch, A, BP), out_dtype)

    # ---------------- static plan: bin channels + grouped cos channels ----- #
    bins = tuple((c, ch[1], ch[2]) for c, ch in enumerate(channels)
                 if ch[0] == "bin")
    grp = {}
    for c, (kind, ai, bi, mdt) in enumerate(channels):
        if kind == "cos":
            grp.setdefault((ai, mdt), []).append((c, bi))
    groups = tuple((k, tuple(v)) for k, v in grp.items())

    # ---------------- kernel ------------------------------------------------ #
    def kernel(*refs):
        out_ref = refs[-1]
        atok = refs[atok_idx][...]                         # (bb, ta, 1) int32
        btok = refs[btok_idx][...]                         # (bb, 1, BP) int32
        amask = (atok != padding).astype(jnp.float32)      # (bb, ta, 1)
        bmask = (btok != padding).astype(jnp.float32)      # (bb, 1, BP)

        # exact-match (binmat) channels — reuse resident token refs when dedup'd
        for c, ai, bi in bins:
            at = atok if ai == atok_idx else refs[ai][...]
            bt = btok if bi == btok_idx else refs[bi][...]
            eq = (at == bt) & (at != padding) & (bt != padding)
            out_ref[:, c, :, :] = eq.astype(out_ref.dtype)

        # cosine channels, grouped by shared (a operand, matmul dtype)
        for (ai, mdt), members in groups:
            a_nat = refs[ai][...]                          # (bb, ta, D)
            a32 = a_nat.astype(jnp.float32)
            a_rnorm = pl.reciprocal(
                jnp.sqrt(jnp.sum(a32 * a32, axis=-1, keepdims=True)) + 1e-9,
                approx=approx_reciprocal)
            a_scale = amask * a_rnorm                      # a-mask folded here
            if mdt == jnp.float32:
                a_n = a32 * a_scale
            else:                                          # bf16-native operand
                a_n = a_nat * a_scale.astype(a_nat.dtype)

            b_ns = []
            for _, bi in members:
                b_nat = refs[bi][...]                      # (bb, BP, D)
                b32 = b_nat.astype(jnp.float32)
                b_rnorm = pl.reciprocal(
                    jnp.sqrt(jnp.sum(b32 * b32, axis=-1, keepdims=True)) + 1e-9,
                    approx=approx_reciprocal)
                if mdt == jnp.float32:
                    b_ns.append(b32 * b_rnorm)
                else:
                    b_ns.append(b_nat * b_rnorm.astype(b_nat.dtype))
            b_cat = b_ns[0] if len(b_ns) == 1 else jnp.concatenate(b_ns, axis=1)

            # Batched matmul contracting D of both operands (no explicit b.T).
            sim = lax.dot_general(
                a_n, b_cat,
                dimension_numbers=(((2,), (2,)), ((0,), (0,))),
                preferred_element_type=jnp.float32)        # (bb, ta, k*BP)

            for s, (c, _) in enumerate(members):
                slab = sim[:, :, s * BP:(s + 1) * BP] * bmask   # b-mask post-mm
                out_ref[:, c, :, :] = slab.astype(out_ref.dtype)

    out = pl.pallas_call(
        kernel,
        out_shape=out_shape,
        grid=(BAT // bb, A // ta),
        in_specs=in_specs,
        out_specs=out_spec,
        compiler_params=pltpu.CompilerParams(
            dimension_semantics=("parallel", "parallel"),
            vmem_limit_bytes=vmem_limit),
    )(*prepared)

    if BP != B:
        out = out[..., :B]                                 # drop lane padding
    return out


# --------------------------------------------------------------------------- #
# Pure-JAX reference (PyTorch semantics) for the correctness check
# --------------------------------------------------------------------------- #
def _ref_cos_simmat(a, b, a_tok, b_tok, padding):
    BAT, A, _ = a.shape
    B = b.shape[1]
    a_den = jnp.linalg.norm(a, axis=2).reshape(BAT, A, 1) + 1e-9
    b_den = jnp.linalg.norm(b, axis=2).reshape(BAT, 1, B) + 1e-9
    sim = jnp.einsum("bad,bkd->bak", a, b) / (a_den * b_den)
    amask = (a_tok.reshape(BAT, A, 1) != padding).astype(jnp.float32)
    bmask = (b_tok.reshape(BAT, 1, B) != padding).astype(jnp.float32)
    return sim * amask * bmask


def _ref_binmat(a, b, padding):
    BAT, A = a.shape
    B = b.shape[1]
    a = a.reshape(BAT, A, 1)
    b = b.reshape(BAT, 1, B)
    return ((a == b) & (a != padding) & (b != padding)).astype(jnp.float32)


# --------------------------------------------------------------------------- #
# Main
# --------------------------------------------------------------------------- #
if __name__ == "__main__":
    key = jax.random.PRNGKey(0)
    k1, k2, k3, k4, k5 = jax.random.split(key, 5)
    PAD = -1

    # ---- test 1: Conv-KNRM style (1 cosine channel + 1 token-id channel) ---
    BAT, A, B, D = 2, 8, 16, 32
    a_emb = jax.random.normal(k1, (BAT, A, D), dtype=jnp.float32)
    b_emb = jax.random.normal(k2, (BAT, B, D), dtype=jnp.float32)
    a_tok = jax.random.randint(k3, (BAT, A), -1, 10, dtype=jnp.int32)
    b_tok = jax.random.randint(k4, (BAT, B), -1, 10, dtype=jnp.int32)

    out = interaction_matrix([a_emb, a_tok], [b_emb, b_tok], a_tok, b_tok,
                             padding=PAD)
    out = jax.block_until_ready(out)
    assert out.shape == (BAT, 2, A, B), out.shape
    ref = jnp.stack([_ref_cos_simmat(a_emb, b_emb, a_tok, b_tok, PAD),
                     _ref_binmat(a_tok, b_tok, PAD)], axis=1)
    np.testing.assert_allclose(np.asarray(out), np.asarray(ref),
                               rtol=1e-5, atol=1e-5)

    # ---- test 2: shared-a grouping, A-tiling grid, lane padding (B=200) ----
    BAT2, A2, B2, D2 = 2, 16, 200, 64
    ka, kb, kb2, kta, ktb = jax.random.split(k5, 5)
    a_emb2 = jax.random.normal(ka, (BAT2, A2, D2), dtype=jnp.float32)
    b_emb2 = jax.random.normal(kb, (BAT2, B2, D2), dtype=jnp.float32)
    b_emb3 = jax.random.normal(kb2, (BAT2, B2, D2), dtype=jnp.float32)
    a_tok2 = jax.random.randint(kta, (BAT2, A2), -1, 10, dtype=jnp.int32)
    b_tok2 = jax.random.randint(ktb, (BAT2, B2), -1, 10, dtype=jnp.int32)

    out2 = interaction_matrix([a_emb2, a_emb2, a_tok2],
                              [b_emb2, b_emb3, b_tok2],
                              a_tok2, b_tok2, padding=PAD,
                              batch_block=1, a_block=8)
    out2 = jax.block_until_ready(out2)
    assert out2.shape == (BAT2, 3, A2, B2), out2.shape
    ref2 = jnp.stack([_ref_cos_simmat(a_emb2, b_emb2, a_tok2, b_tok2, PAD),
                      _ref_cos_simmat(a_emb2, b_emb3, a_tok2, b_tok2, PAD),
                      _ref_binmat(a_tok2, b_tok2, PAD)], axis=1)
    np.testing.assert_allclose(np.asarray(out2), np.asarray(ref2),
                               rtol=1e-5, atol=2e-5)

    print("KERNEL_OK")
</pallas_src>

<mosaic_0001>
module attributes {stable_mosaic.version = 11 : i64} {
  func.func @kernel(%arg0: i32, %arg1: i32, %arg2: memref<2x8x1xi32, #tpu.memory_space<vmem>>, %arg3: memref<2x1x128xi32, #tpu.memory_space<vmem>>, %arg4: memref<2x8x32xf32, #tpu.memory_space<vmem>>, %arg5: memref<2x128x32xf32, #tpu.memory_space<vmem>>, %arg6: memref<2x2x8x128xf32, #tpu.memory_space<vmem>>) attributes {dimension_semantics = [#tpu.dimension_semantics<parallel>, #tpu.dimension_semantics<parallel>], iteration_bounds = array<i64: 1, 1>, scalar_prefetch = 0 : i64, scratch_operands = 0 : i64, tpu.core_type = #tpu.core_type<tc>, window_params = [{transform_indices = @transform_0, window_bounds = array<i64: 2, 8, 1>}, {transform_indices = @transform_1, window_bounds = array<i64: 2, 1, 128>}, {transform_indices = @transform_2, window_bounds = array<i64: 2, 8, 32>}, {transform_indices = @transform_3, window_bounds = array<i64: 2, 128, 32>}, {transform_indices = @transform_4, window_bounds = array<i64: 2, 2, 8, 128>}]} {
    %c0 = arith.constant 0 : index
    %c0_0 = arith.constant 0 : index
    %c0_1 = arith.constant 0 : index
    %0 = vector.load %arg2[%c0, %c0_0, %c0_1] : memref<2x8x1xi32, #tpu.memory_space<vmem>>, vector<2x8x1xi32>
    %c0_2 = arith.constant 0 : index
    %c0_3 = arith.constant 0 : index
    %c0_4 = arith.constant 0 : index
    %1 = vector.load %arg3[%c0_2, %c0_3, %c0_4] : memref<2x1x128xi32, #tpu.memory_space<vmem>>, vector<2x1x128xi32>
    %c-1_i32 = arith.constant -1 : i32
    %2 = vector.broadcast %c-1_i32 : i32 to vector<2x8x1xi32>
    %3 = arith.cmpi ne, %0, %2 : vector<2x8x1xi32>
    %4 = arith.extui %3 : vector<2x8x1xi1> to vector<2x8x1xi32>
    %5 = arith.sitofp %4 : vector<2x8x1xi32> to vector<2x8x1xf32>
    %c-1_i32_5 = arith.constant -1 : i32
    %6 = vector.broadcast %c-1_i32_5 : i32 to vector<2x1x128xi32>
    %7 = arith.cmpi ne, %1, %6 : vector<2x1x128xi32>
    %8 = arith.extui %7 : vector<2x1x128xi1> to vector<2x1x128xi32>
    %9 = arith.sitofp %8 : vector<2x1x128xi32> to vector<2x1x128xf32>
    %10 = vector.broadcast %0 : vector<2x8x1xi32> to vector<2x8x128xi32>
    %11 = vector.broadcast %1 : vector<2x1x128xi32> to vector<2x8x128xi32>
    %12 = arith.cmpi eq, %10, %11 : vector<2x8x128xi32>
    %c-1_i32_6 = arith.constant -1 : i32
    %13 = vector.broadcast %c-1_i32_6 : i32 to vector<2x8x1xi32>
    %14 = arith.cmpi ne, %0, %13 : vector<2x8x1xi32>
    %15 = vector.broadcast %14 : vector<2x8x1xi1> to vector<2x8x128xi1>
    %16 = arith.andi %12, %15 : vector<2x8x128xi1>
    %c-1_i32_7 = arith.constant -1 : i32
    %17 = vector.broadcast %c-1_i32_7 : i32 to vector<2x1x128xi32>
    %18 = arith.cmpi ne, %1, %17 : vector<2x1x128xi32>
    %19 = vector.broadcast %18 : vector<2x1x128xi1> to vector<2x8x128xi1>
    %20 = arith.andi %16, %19 : vector<2x8x128xi1>
    %21 = arith.extui %20 : vector<2x8x128xi1> to vector<2x8x128xi32>
    %22 = arith.sitofp %21 : vector<2x8x128xi32> to vector<2x8x128xf32>
    %c0_8 = arith.constant 0 : index
    %c1 = arith.constant 1 : index
    %c0_9 = arith.constant 0 : index
    %c0_10 = arith.constant 0 : index
    %23 = vector.load %arg6[%c0_8, %c1, %c0_9, %c0_10] : memref<2x2x8x128xf32, #tpu.memory_space<vmem>>, vector<2x1x8x128xf32>
    %24 = vector.shape_cast %23 : vector<2x1x8x128xf32> to vector<2x8x128xf32>
    %25 = vector.shape_cast %22 : vector<2x8x128xf32> to vector<2x1x8x128xf32>
    tpu.vector_store %arg6[%c0_8, %c1, %c0_9, %c0_10], %25 {strides = array<i32>} : memref<2x2x8x128xf32, #tpu.memory_space<vmem>>, vector<2x1x8x128xf32>,
    %c0_11 = arith.constant 0 : index
    %c0_12 = arith.constant 0 : index
    %c0_13 = arith.constant 0 : index
    %26 = vector.load %arg4[%c0_11, %c0_12, %c0_13] : memref<2x8x32xf32, #tpu.memory_space<vmem>>, vector<2x8x32xf32>
    %27 = arith.mulf %26, %26 : vector<2x8x32xf32>
    %cst = arith.constant dense<0.000000e+00> : vector<2x8xf32>
    %28 = vector.multi_reduction <add>, %27, %cst [2] : vector<2x8x32xf32> to vector<2x8xf32>
    %29 = vector.shape_cast %28 : vector<2x8xf32> to vector<2x8x1xf32>
    %30 = math.sqrt %29 : vector<2x8x1xf32>
    %cst_14 = arith.constant 9.99999971E-10 : f32
    %31 = vector.broadcast %cst_14 : f32 to vector<2x8x1xf32>
    %32 = arith.addf %30, %31 : vector<2x8x1xf32>
    %33 = tpu.reciprocal %32 : vector<2x8x1xf32> -> vector<2x8x1xf32>
    %34 = arith.mulf %5, %33 : vector<2x8x1xf32>
    %35 = vector.broadcast %34 : vector<2x8x1xf32> to vector<2x8x32xf32>
    %36 = arith.mulf %26, %35 : vector<2x8x32xf32>
    %c0_15 = arith.constant 0 : index
    %c0_16 = arith.constant 0 : index
    %c0_17 = arith.constant 0 : index
    %37 = vector.load %arg5[%c0_15, %c0_16, %c0_17] : memref<2x128x32xf32, #tpu.memory_space<vmem>>, vector<2x128x32xf32>
    %38 = arith.mulf %37, %37 : vector<2x128x32xf32>
    %cst_18 = arith.constant dense<0.000000e+00> : vector<2x128xf32>
    %39 = vector.multi_reduction <add>, %38, %cst_18 [2] : vector<2x128x32xf32> to vector<2x128xf32>
    %40 = vector.shape_cast %39 : vector<2x128xf32> to vector<2x128x1xf32>
    %41 = math.sqrt %40 : vector<2x128x1xf32>
    %cst_19 = arith.constant 9.99999971E-10 : f32
    %42 = vector.broadcast %cst_19 : f32 to vector<2x128x1xf32>
    %43 = arith.addf %41, %42 : vector<2x128x1xf32>
    %44 = tpu.reciprocal %43 : vector<2x128x1xf32> -> vector<2x128x1xf32>
    %45 = vector.broadcast %44 : vector<2x128x1xf32> to vector<2x128x32xf32>
    %46 = arith.mulf %37, %45 : vector<2x128x32xf32>
    %cst_20 = arith.constant dense<0.000000e+00> : vector<2x8x128xf32>
    %47 = tpu.matmul %36, %46, %cst_20 {dimension_numbers = #tpu.dot_dimension_numbers<[2], [2], [1], [1], [0, 0, 0, 1, 1, 1], [0], [0]>} : vector<2x8x32xf32>, vector<2x128x32xf32>, vector<2x8x128xf32> -> vector<2x8x128xf32>
    %48 = vector.broadcast %9 : vector<2x1x128xf32> to vector<2x8x128xf32>
    %49 = arith.mulf %47, %48 : vector<2x8x128xf32>
    %c0_21 = arith.constant 0 : index
    %c0_22 = arith.constant 0 : index
    %c0_23 = arith.constant 0 : index
    %c0_24 = arith.constant 0 : index
    %50 = vector.load %arg6[%c0_21, %c0_22, %c0_23, %c0_24] : memref<2x2x8x128xf32, #tpu.memory_space<vmem>>, vector<2x1x8x128xf32>
    %51 = vector.shape_cast %50 : vector<2x1x8x128xf32> to vector<2x8x128xf32>
    %52 = vector.shape_cast %49 : vector<2x8x128xf32> to vector<2x1x8x128xf32>
    tpu.vector_store %arg6[%c0_21, %c0_22, %c0_23, %c0_24], %52 {strides = array<i32>} : memref<2x2x8x128xf32, #tpu.memory_space<vmem>>, vector<2x1x8x128xf32>,
    return
  }
  func.func @transform_0(%arg0: i32, %arg1: i32) -> (i32, i32, i32) {
    %c0_i32 = arith.constant 0 : i32
    %c0_i32_0 = arith.constant 0 : i32
    return %arg0, %arg1, %c0_i32 : i32, i32, i32
  }
  func.func @transform_1(%arg0: i32, %arg1: i32) -> (i32, i32, i32) {
    %c0_i32 = arith.constant 0 : i32
    %c0_i32_0 = arith.constant 0 : i32
    %c0_i32_1 = arith.constant 0 : i32
    return %arg0, %c0_i32, %c0_i32_0 : i32, i32, i32
  }
  func.func @transform_2(%arg0: i32, %arg1: i32) -> (i32, i32, i32) {
    %c0_i32 = arith.constant 0 : i32
    %c0_i32_0 = arith.constant 0 : i32
    return %arg0, %arg1, %c0_i32 : i32, i32, i32
  }
  func.func @transform_3(%arg0: i32, %arg1: i32) -> (i32, i32, i32) {
    %c0_i32 = arith.constant 0 : i32
    %c0_i32_0 = arith.constant 0 : i32
    %c0_i32_1 = arith.constant 0 : i32
    return %arg0, %c0_i32, %c0_i32_0 : i32, i32, i32
  }
  func.func @transform_4(%arg0: i32, %arg1: i32) -> (i32, i32, i32, i32) {
    %c0_i32 = arith.constant 0 : i32
    %c0_i32_0 = arith.constant 0 : i32
    %c0_i32_1 = arith.constant 0 : i32
    return %arg0, %c0_i32, %arg1, %c0_i32_0 : i32, i32, i32, i32
  }
}

</mosaic_0001>

<llo_original>
// kernel: tpu_custom_call.1
$region0: #{tpu_custom_call.1}
  #allocation0 [shape = 'u32[]', space=smem, size = 0x4, offset = 0x4, fixed_abs, tag = 'smem constant byte address 0x4 - core index']
  #allocation1 [shape = 'u32[144,128]{1,0:T(1,128)}', space=vmem, size = 0x12000, scoped, tag = 'internal scratch']
  %s0 = inlined_call_operand.vmem [shape: s32[2,8,1], index: 0, kind: input, shape index: {}]
  %s1 = inlined_call_operand.vmem [shape: s32[2,1,128], index: 1, kind: input, shape index: {}]
  %s2 = inlined_call_operand.vmem [shape: f32[2,8,32], index: 2, kind: input, shape index: {}]
  %s3 = inlined_call_operand.vmem [shape: f32[2,128,32], index: 3, kind: input, shape index: {}]
  %s4 = inlined_call_operand.hbm [shape: f32[2,2,8,128], index: 4, kind: output, shape index: {}]
  %s5 = sld [smem:[#allocation0]]
  $region26: #{tpu_custom_call.1} parent=0
    _
  %s7 = ssub.s32 1, %s5
  %s8 = scalar_select 0, %s7, %s5
  $region1: #{tpu_custom_call.1} parent=0
    #allocation2 [shape = 'u8[16384]{0}', space=vmem, size = 0x4000, scoped, tag = 'output window, operand 0, single buffered']
    #allocation3 [shape = 's32[1]{0}', space=sflag, size = 0x4, scoped, tag = 'scoped memory for tpu_custom_call.1']
    %9 = vsyncpa [#allocation3], 0
    // Predicated region
    $region2: #{tpu_custom_call.1} parent=1 // pred_check
      _
    $region3: #{tpu_custom_call.1} parent=1 // pred_check_branch
      %11 = sbr.rel (0) target = $region5
    $region4: #{tpu_custom_call.1} parent=1 // pred_region
      _
    $region5: #{tpu_custom_call.1} parent=1 // pred_fallthru
      _
    // Predicated region
    $region6: #{tpu_custom_call.1} parent=1 // pred_check
      _
    $region7: #{tpu_custom_call.1} parent=1 // pred_check_branch
      %13 = sbr.rel (0) target = $region9
    $region8: #{tpu_custom_call.1} parent=1 // pred_region
      _
    $region9: #{tpu_custom_call.1} parent=1 // pred_fallthru
      _
    // Predicated region
    $region10: #{tpu_custom_call.1} parent=1 // pred_check
      _
    $region11: #{tpu_custom_call.1} parent=1 // pred_check_branch
      %15 = sbr.rel (0) target = $region13
    $region12: #{tpu_custom_call.1} parent=1 // pred_region
      _
    $region13: #{tpu_custom_call.1} parent=1 // pred_fallthru
      _
    // Predicated region
    $region14: #{tpu_custom_call.1} parent=1 // pred_check
      _
    $region15: #{tpu_custom_call.1} parent=1 // pred_check_branch
      %17 = sbr.rel (0) target = $region17
    $region16: #{tpu_custom_call.1} parent=1 // pred_region
      _
    $region17: #{tpu_custom_call.1} parent=1 // pred_fallthru
      _
    %v18 = vld [vmem:[%s0] sm:$0xff]
    %v19 = vld [vmem:[%s0 + $0x8] sm:$0xff]
    %v20 = vld [vmem:[%s1] sm:$0x1]
    %v21 = vld [vmem:[%s1 + $0x1] sm:$0x1]
    %vm22 = vcmp.ne.s32.totalorder %v18, 4294967295
    %vm23 = vcmp.ne.s32.totalorder %v19, 4294967295
    %v24 = vsel %vm22, 1, 0
    %v25 = vsel %vm23, 1, 0
    %v26 = vcvt.s32.f32 %v24
    %v27 = vcvt.s32.f32 %v25
    %vm28 = vcmp.ne.s32.totalorder %v20, 4294967295
    %vm29 = vcmp.ne.s32.totalorder %v21, 4294967295
    %v30 = vsel %vm28, 1, 0
    %v31 = vsel %vm29, 1, 0
    %v32 = vcvt.s32.f32 %v30
    %v33 = vcvt.s32.f32 %v31
    %34 = vset.pattern.permute.xlu0 0
    %35 = vperm.xlu0 %34, %v18
    %v36 = vpop.permute.xlu0 %35
    %37 = vset.pattern.permute.xlu0 0
    %38 = vperm.xlu0 %37, %v19
    %v39 = vpop.permute.xlu0 %38
    %v40 = vlaneseq
    %v41 = vshrl.u32 %v40, 7
    %v42 = vsub.s32 0, %v41
    %v43 = vrot.slane %v20, %v42
    %v44 = vlaneseq
    %v45 = vshrl.u32 %v44, 7
    %v46 = vsub.s32 0, %v45
    %v47 = vrot.slane %v21, %v46
    %vm48 = vcmp.eq.s32.totalorder %v36, %v43
    %vm49 = vcmp.eq.s32.totalorder %v39, %v47
    %50 = vset.pattern.permute.xlu0 0
    %51 = vperm.xlu0 %50, %v24
    %v52 = vpop.permute.xlu0 %51
    %53 = vset.pattern.permute.xlu0 0
    %54 = vperm.xlu0 %53, %v25
    %v55 = vpop.permute.xlu0 %54
    %vm56 = vcmp.eq.s32.totalorder %v52, 1
    %vm57 = vcmp.eq.s32.totalorder %v55, 1
    %vm58 = vmand %vm48, %vm56
    %vm59 = vmand %vm49, %vm57
    %v60 = vlaneseq
    %v61 = vshrl.u32 %v60, 7
    %v62 = vsub.s32 0, %v61
    %v63 = vrot.slane %v30, %v62
    %v64 = vlaneseq
    %v65 = vshrl.u32 %v64, 7
    %v66 = vsub.s32 0, %v65
    %v67 = vrot.slane %v31, %v66
    %vm68 = vcmp.eq.s32.totalorder %v63, 1
    %vm69 = vcmp.eq.s32.totalorder %v67, 1
    %vm70 = vmand %vm58, %vm68
    %vm71 = vmand %vm59, %vm69
    %v72 = vsel %vm70, 1, 0
    %v73 = vsel %vm71, 1, 0
    %v74 = vcvt.s32.f32 %v72
    %v75 = vcvt.s32.f32 %v73
    %s76 = scalar_lea.vmem [#allocation2], 8
    %77 = vst [vmem:[%s76] sm:$0xff] %v74
    %78 = vst [vmem:[%s76 + $0x10] sm:$0xff] %v75
    %v79 = vld [vmem:[%s2] sm:$0xff]
    %v80 = vld [vmem:[%s2 + $0x8] sm:$0xff]
    %v81 = vmul.f32 %v79, %v79
    %v82 = vmul.f32 %v80, %v80
    %vm83 = vcmask 261120
    %v84 = vsel %vm83, %v81, 0.0
    %85 = vadd.xlane.f32.xlu0 %v84
    %v86 = vpop.xlane.xlu0 %85
    %v87 = vsel %vm83, %v82, 0.0
    %88 = vadd.xlane.f32.xlu0 %v87
    %v89 = vpop.xlane.xlu0 %88
    %v90 = vrsqrt.pop %v86
    %v91 = vmul.f32 %v86, %v90
    %vm92 = vcmp.eq.f32.partialorder %v86, inf
    %v93 = vsel %vm92, %v86, %v91
    %vm94 = vcmp.eq.f32.partialorder %v86, 0.0
    %v95 = vand.u32 %v86, 2147483648
    %v96 = vsel %vm94, %v95, %v93
    %v97 = vrsqrt.pop %v89
    %v98 = vmul.f32 %v89, %v97
    %vm99 = vcmp.eq.f32.partialorder %v89, inf
    %v100 = vsel %vm99, %v89, %v98
    %vm101 = vcmp.eq.f32.partialorder %v89, 0.0
    %v102 = vand.u32 %v89, 2147483648
    %v103 = vsel %vm101, %v102, %v100
    %v104 = vadd.f32 %v96, 1e-09
    %v105 = vadd.f32 %v103, 1e-09
    %v106 = vrcp.pop %v104
    %v107 = vrcp.pop %v105
    %v108 = vmul.f32 %v26, %v106
    %v109 = vmul.f32 %v27, %v107
    %111 = vset.pattern.permute.xlu0 0
    %112 = vperm.xlu0 %111, %v108
    %v113 = vpop.permute.xlu0 %112
    %116 = vset.pattern.permute.xlu0 0
    %117 = vperm.xlu0 %116, %v109
    %v118 = vpop.permute.xlu0 %117
    %v120 = vmul.f32 %v79, %v113
    %v121 = vmul.f32 %v80, %v118
    %v122 = vld [vmem:[%s3] sm:$0xff]
    %v123 = vld [vmem:[%s3 + $0x8] sm:$0xff]
    %v124 = vld [vmem:[%s3 + $0x10] sm:$0xff]
    %v125 = vld [vmem:[%s3 + $0x18] sm:$0xff]
    %v126 = vld [vmem:[%s3 + $0x20] sm:$0xff]
    %v127 = vld [vmem:[%s3 + $0x28] sm:$0xff]
    %v128 = vld [vmem:[%s3 + $0x30] sm:$0xff]
    %v129 = vld [vmem:[%s3 + $0x38] sm:$0xff]
    %v130 = vld [vmem:[%s3 + $0x40] sm:$0xff]
    %v131 = vld [vmem:[%s3 + $0x48] sm:$0xff]
    %v132 = vld [vmem:[%s3 + $0x50] sm:$0xff]
    %v133 = vld [vmem:[%s3 + $0x58] sm:$0xff]
    %v134 = vld [vmem:[%s3 + $0x60] sm:$0xff]
    %v135 = vld [vmem:[%s3 + $0x68] sm:$0xff]
    %v136 = vld [vmem:[%s3 + $0x70] sm:$0xff]
    %v137 = vld [vmem:[%s3 + $0x78] sm:$0xff]
    %v138 = vld [vmem:[%s3 + $0x80] sm:$0xff]
    %v139 = vld [vmem:[%s3 + $0x88] sm:$0xff]
    %v140 = vld [vmem:[%s3 + $0x90] sm:$0xff]
    %v141 = vld [vmem:[%s3 + $0x98] sm:$0xff]
    %v142 = vld [vmem:[%s3 + $0xa0] sm:$0xff]
    %v143 = vld [vmem:[%s3 + $0xa8] sm:$0xff]
    %v144 = vld [vmem:[%s3 + $0xb0] sm:$0xff]
    %v145 = vld [vmem:[%s3 + $0xb8] sm:$0xff]
    %v146 = vld [vmem:[%s3 + $0xc0] sm:$0xff]
    %v147 = vld [vmem:[%s3 + $0xc8] sm:$0xff]
    %v148 = vld [vmem:[%s3 + $0xd0] sm:$0xff]
    %v149 = vld [vmem:[%s3 + $0xd8] sm:$0xff]
    %v150 = vld [vmem:[%s3 + $0xe0] sm:$0xff]
    %v151 = vld [vmem:[%s3 + $0xe8] sm:$0xff]
    %v152 = vld [vmem:[%s3 + $0xf0] sm:$0xff]
    %v153 = vld [vmem:[%s3 + $0xf8] sm:$0xff]
    %v154 = vmul.f32 %v122, %v122
    %v155 = vmul.f32 %v123, %v123
    %v156 = vmul.f32 %v124, %v124
    %v157 = vmul.f32 %v125, %v125
    %v158 = vmul.f32 %v126, %v126
    %v159 = vmul.f32 %v127, %v127
    %v160 = vmul.f32 %v128, %v128
    %v161 = vmul.f32 %v129, %v129
    %v162 = vmul.f32 %v130, %v130
    %v163 = vmul.f32 %v131, %v131
    %v164 = vmul.f32 %v132, %v132
    %v165 = vmul.f32 %v133, %v133
    %v166 = vmul.f32 %v134, %v134
    %v167 = vmul.f32 %v135, %v135
    %v168 = vmul.f32 %v136, %v136
    %v169 = vmul.f32 %v137, %v137
    %v170 = vmul.f32 %v138, %v138
    %v171 = vmul.f32 %v139, %v139
    %v172 = vmul.f32 %v140, %v140
    %v173 = vmul.f32 %v141, %v141
    %v174 = vmul.f32 %v142, %v142
    %v175 = vmul.f32 %v143, %v143
    %v176 = vmul.f32 %v144, %v144
    %v177 = vmul.f32 %v145, %v145
    %v178 = vmul.f32 %v146, %v146
    %v179 = vmul.f32 %v147, %v147
    %v180 = vmul.f32 %v148, %v148
    %v181 = vmul.f32 %v149, %v149
    %v182 = vmul.f32 %v150, %v150
    %v183 = vmul.f32 %v151, %v151
    %v184 = vmul.f32 %v152, %v152
    %v185 = vmul.f32 %v153, %v153
    %v186 = vsel %vm83, %v154, 0.0
    %187 = vadd.xlane.f32.xlu0 %v186
    %v188 = vpop.xlane.xlu0 %187
    %v189 = vsel %vm83, %v155, 0.0
    %190 = vadd.xlane.f32.xlu0 %v189
    %v191 = vpop.xlane.xlu0 %190
    %v192 = vsel %vm83, %v156, 0.0
    %193 = vadd.xlane.f32.xlu0 %v192
    %v194 = vpop.xlane.xlu0 %193
    %v195 = vsel %vm83, %v157, 0.0
    %196 = vadd.xlane.f32.xlu0 %v195
    %v197 = vpop.xlane.xlu0 %196
    %v198 = vsel %vm83, %v158, 0.0
    %199 = vadd.xlane.f32.xlu0 %v198
    %v200 = vpop.xlane.xlu0 %199
    %v201 = vsel %vm83, %v159, 0.0
    %202 = vadd.xlane.f32.xlu0 %v201
    %v203 = vpop.xlane.xlu0 %202
    %v204 = vsel %vm83, %v160, 0.0
    %205 = vadd.xlane.f32.xlu0 %v204
    %v206 = vpop.xlane.xlu0 %205
    %v207 = vsel %vm83, %v161, 0.0
    %208 = vadd.xlane.f32.xlu0 %v207
    %v209 = vpop.xlane.xlu0 %208
    %v210 = vsel %vm83, %v162, 0.0
    %211 = vadd.xlane.f32.xlu0 %v210
    %v212 = vpop.xlane.xlu0 %211
    %v213 = vsel %vm83, %v163, 0.0
    %214 = vadd.xlane.f32.xlu0 %v213
    %v215 = vpop.xlane.xlu0 %214
    %v216 = vsel %vm83, %v164, 0.0
    %217 = vadd.xlane.f32.xlu0 %v216
    %v218 = vpop.xlane.xlu0 %217
    %v219 = vsel %vm83, %v165, 0.0
    %220 = vadd.xlane.f32.xlu0 %v219
    %v221 = vpop.xlane.xlu0 %220
    %v222 = vsel %vm83, %v166, 0.0
    %223 = vadd.xlane.f32.xlu0 %v222
    %v224 = vpop.xlane.xlu0 %223
    %v225 = vsel %vm83, %v167, 0.0
    %226 = vadd.xlane.f32.xlu0 %v225
    %v227 = vpop.xlane.xlu0 %226
    %v228 = vsel %vm83, %v168, 0.0
    %229 = vadd.xlane.f32.xlu0 %v228
    %v230 = vpop.xlane.xlu0 %229
    %v231 = vsel %vm83, %v169, 0.0
    %232 = vadd.xlane.f32.xlu0 %v231
    %v233 = vpop.xlane.xlu0 %232
    %v234 = vsel %vm83, %v170, 0.0
    %235 = vadd.xlane.f32.xlu0 %v234
    %v236 = vpop.xlane.xlu0 %235
    %v237 = vsel %vm83, %v171, 0.0
    %238 = vadd.xlane.f32.xlu0 %v237
    %v239 = vpop.xlane.xlu0 %238
    %v240 = vsel %vm83, %v172, 0.0
    %241 = vadd.xlane.f32.xlu0 %v240
    %v242 = vpop.xlane.xlu0 %241
    %v243 = vsel %vm83, %v173, 0.0
    %244 = vadd.xlane.f32.xlu0 %v243
    %v245 = vpop.xlane.xlu0 %244
    %v246 = vsel %vm83, %v174, 0.0
    %247 = vadd.xlane.f32.xlu0 %v246
    %v248 = vpop.xlane.xlu0 %247
    %v249 = vsel %vm83, %v175, 0.0
    %250 = vadd.xlane.f32.xlu0 %v249
    %v251 = vpop.xlane.xlu0 %250
    %v252 = vsel %vm83, %v176, 0.0
    %253 = vadd.xlane.f32.xlu0 %v252
    %v254 = vpop.xlane.xlu0 %253
    %v255 = vsel %vm83, %v177, 0.0
    %256 = vadd.xlane.f32.xlu0 %v255
    %v257 = vpop.xlane.xlu0 %256
    %v258 = vsel %vm83, %v178, 0.0
    %259 = vadd.xlane.f32.xlu0 %v258
    %v260 = vpop.xlane.xlu0 %259
    %v261 = vsel %vm83, %v179, 0.0
    %262 = vadd.xlane.f32.xlu0 %v261
    %v263 = vpop.xlane.xlu0 %262
    %v264 = vsel %vm83, %v180, 0.0
    %265 = vadd.xlane.f32.xlu0 %v264
    %v266 = vpop.xlane.xlu0 %265
    %v267 = vsel %vm83, %v181, 0.0
    %268 = vadd.xlane.f32.xlu0 %v267
    %v269 = vpop.xlane.xlu0 %268
    %v270 = vsel %vm83, %v182, 0.0
    %271 = vadd.xlane.f32.xlu0 %v270
    %v272 = vpop.xlane.xlu0 %271
    %v273 = vsel %vm83, %v183, 0.0
    %274 = vadd.xlane.f32.xlu0 %v273
    %v275 = vpop.xlane.xlu0 %274
    %v276 = vsel %vm83, %v184, 0.0
    %277 = vadd.xlane.f32.xlu0 %v276
    %v278 = vpop.xlane.xlu0 %277
    %v279 = vsel %vm83, %v185, 0.0
    %280 = vadd.xlane.f32.xlu0 %v279
    %v281 = vpop.xlane.xlu0 %280
    %v282 = vrsqrt.pop %v188
    %v283 = vmul.f32 %v188, %v282
    %vm284 = vcmp.eq.f32.partialorder %v188, inf
    %v285 = vsel %vm284, %v188, %v283
    %vm286 = vcmp.eq.f32.partialorder %v188, 0.0
    %v287 = vand.u32 %v188, 2147483648
    %v288 = vsel %vm286, %v287, %v285
    %v289 = vrsqrt.pop %v191
    %v290 = vmul.f32 %v191, %v289
    %vm291 = vcmp.eq.f32.partialorder %v191, inf
    %v292 = vsel %vm291, %v191, %v290
    %vm293 = vcmp.eq.f32.partialorder %v191, 0.0
    %v294 = vand.u32 %v191, 2147483648
    %v295 = vsel %vm293, %v294, %v292
    %v296 = vrsqrt.pop %v194
    %v297 = vmul.f32 %v194, %v296
    %vm298 = vcmp.eq.f32.partialorder %v194, inf
    %v299 = vsel %vm298, %v194, %v297
    %vm300 = vcmp.eq.f32.partialorder %v194, 0.0
    %v301 = vand.u32 %v194, 2147483648
    %v302 = vsel %vm300, %v301, %v299
    %v303 = vrsqrt.pop %v197
    %v304 = vmul.f32 %v197, %v303
    %vm305 = vcmp.eq.f32.partialorder %v197, inf
    %v306 = vsel %vm305, %v197, %v304
    %vm307 = vcmp.eq.f32.partialorder %v197, 0.0
    %v308 = vand.u32 %v197, 2147483648
    %v309 = vsel %vm307, %v308, %v306
    %v310 = vrsqrt.pop %v200
    %v311 = vmul.f32 %v200, %v310
    %vm312 = vcmp.eq.f32.partialorder %v200, inf
    %v313 = vsel %vm312, %v200, %v311
    %vm314 = vcmp.eq.f32.partialorder %v200, 0.0
    %v315 = vand.u32 %v200, 2147483648
    %v316 = vsel %vm314, %v315, %v313
    %v317 = vrsqrt.pop %v203
    %v318 = vmul.f32 %v203, %v317
    %vm319 = vcmp.eq.f32.partialorder %v203, inf
    %v320 = vsel %vm319, %v203, %v318
    %vm321 = vcmp.eq.f32.partialorder %v203, 0.0
    %v322 = vand.u32 %v203, 2147483648
    %v323 = vsel %vm321, %v322, %v320
    %v324 = vrsqrt.pop %v206
    %v325 = vmul.f32 %v206, %v324
    %vm326 = vcmp.eq.f32.partialorder %v206, inf
    %v327 = vsel %vm326, %v206, %v325
    %vm328 = vcmp.eq.f32.partialorder %v206, 0.0
    %v329 = vand.u32 %v206, 2147483648
    %v330 = vsel %vm328, %v329, %v327
    %v331 = vrsqrt.pop %v209
    %v332 = vmul.f32 %v209, %v331
    %vm333 = vcmp.eq.f32.partialorder %v209, inf
    %v334 = vsel %vm333, %v209, %v332
    %vm335 = vcmp.eq.f32.partialorder %v209, 0.0
    %v336 = vand.u32 %v209, 2147483648
    %v337 = vsel %vm335, %v336, %v334
    %v338 = vrsqrt.pop %v212
    %v339 = vmul.f32 %v212, %v338
    %vm340 = vcmp.eq.f32.partialorder %v212, inf
    %v341 = vsel %vm340, %v212, %v339
    %vm342 = vcmp.eq.f32.partialorder %v212, 0.0
    %v343 = vand.u32 %v212, 2147483648
    %v344 = vsel %vm342, %v343, %v341
    %v345 = vrsqrt.pop %v215
    %v346 = vmul.f32 %v215, %v345
    %vm347 = vcmp.eq.f32.partialorder %v215, inf
    %v348 = vsel %vm347, %v215, %v346
    %vm349 = vcmp.eq.f32.partialorder %v215, 0.0
    %v350 = vand.u32 %v215, 2147483648
    %v351 = vsel %vm349, %v350, %v348
    %v352 = vrsqrt.pop %v218
    %v353 = vmul.f32 %v218, %v352
    %vm354 = vcmp.eq.f32.partialorder %v218, inf
    %v355 = vsel %vm354, %v218, %v353
    %vm356 = vcmp.eq.f32.partialorder %v218, 0.0
    %v357 = vand.u32 %v218, 2147483648
    %v358 = vsel %vm356, %v357, %v355
    %v359 = vrsqrt.pop %v221
    %v360 = vmul.f32 %v221, %v359
    %vm361 = vcmp.eq.f32.partialorder %v221, inf
    %v362 = vsel %vm361, %v221, %v360
    %vm363 = vcmp.eq.f32.partialorder %v221, 0.0
    %v364 = vand.u32 %v221, 2147483648
    %v365 = vsel %vm363, %v364, %v362
    %v366 = vrsqrt.pop %v224
    %v367 = vmul.f32 %v224, %v366
    %vm368 = vcmp.eq.f32.partialorder %v224, inf
    %v369 = vsel %vm368, %v224, %v367
    %vm370 = vcmp.eq.f32.partialorder %v224, 0.0
    %v371 = vand.u32 %v224, 2147483648
    %v372 = vsel %vm370, %v371, %v369
    %v373 = vrsqrt.pop %v227
    %v374 = vmul.f32 %v227, %v373
    %vm375 = vcmp.eq.f32.partialorder %v227, inf
    %v376 = vsel %vm375, %v227, %v374
    %vm377 = vcmp.eq.f32.partialorder %v227, 0.0
    %v378 = vand.u32 %v227, 2147483648
    %v379 = vsel %vm377, %v378, %v376
    %v380 = vrsqrt.pop %v230
    %v381 = vmul.f32 %v230, %v380
    %vm382 = vcmp.eq.f32.partialorder %v230, inf
    %v383 = vsel %vm382, %v230, %v381
    %vm384 = vcmp.eq.f32.partialorder %v230, 0.0
    %v385 = vand.u32 %v230, 2147483648
    %v386 = vsel %vm384, %v385, %v383
    %v387 = vrsqrt.pop %v233
    %v388 = vmul.f32 %v233, %v387
    %vm389 = vcmp.eq.f32.partialorder %v233, inf
    %v390 = vsel %vm389, %v233, %v388
    %vm391 = vcmp.eq.f32.partialorder %v233, 0.0
    %v392 = vand.u32 %v233, 2147483648
    %v393 = vsel %vm391, %v392, %v390
    %v394 = vrsqrt.pop %v236
    %v395 = vmul.f32 %v236, %v394
    %vm396 = vcmp.eq.f32.partialorder %v236, inf
    %v397 = vsel %vm396, %v236, %v395
    %vm398 = vcmp.eq.f32.partialorder %v236, 0.0
    %v399 = vand.u32 %v236, 2147483648
    %v400 = vsel %vm398, %v399, %v397
    %v401 = vrsqrt.pop %v239
    %v402 = vmul.f32 %v239, %v401
    %vm403 = vcmp.eq.f32.partialorder %v239, inf
    %v404 = vsel %vm403, %v239, %v402
    %vm405 = vcmp.eq.f32.partialorder %v239, 0.0
    %v406 = vand.u32 %v239, 2147483648
    %v407 = vsel %vm405, %v406, %v404
    %v408 = vrsqrt.pop %v242
    %v409 = vmul.f32 %v242, %v408
    %vm410 = vcmp.eq.f32.partialorder %v242, inf
    %v411 = vsel %vm410, %v242, %v409
    %vm412 = vcmp.eq.f32.partialorder %v242, 0.0
    %v413 = vand.u32 %v242, 2147483648
    %v414 = vsel %vm412, %v413, %v411
    %v415 = vrsqrt.pop %v245
    %v416 = vmul.f32 %v245, %v415
    %vm417 = vcmp.eq.f32.partialorder %v245, inf
    %v418 = vsel %vm417, %v245, %v416
    %vm419 = vcmp.eq.f32.partialorder %v245, 0.0
    %v420 = vand.u32 %v245, 2147483648
    %v421 = vsel %vm419, %v420, %v418
    %v422 = vrsqrt.pop %v248
    %v423 = vmul.f32 %v248, %v422
    %vm424 = vcmp.eq.f32.partialorder %v248, inf
    %v425 = vsel %vm424, %v248, %v423
    %vm426 = vcmp.eq.f32.partialorder %v248, 0.0
    %v427 = vand.u32 %v248, 2147483648
    %v428 = vsel %vm426, %v427, %v425
    %v429 = vrsqrt.pop %v251
    %v430 = vmul.f32 %v251, %v429
    %vm431 = vcmp.eq.f32.partialorder %v251, inf
    %v432 = vsel %vm431, %v251, %v430
    %vm433 = vcmp.eq.f32.partialorder %v251, 0.0
    %v434 = vand.u32 %v251, 2147483648
    %v435 = vsel %vm433, %v434, %v432
    %v436 = vrsqrt.pop %v254
    %v437 = vmul.f32 %v254, %v436
    %vm438 = vcmp.eq.f32.partialorder %v254, inf
    %v439 = vsel %vm438, %v254, %v437
    %vm440 = vcmp.eq.f32.partialorder %v254, 0.0
    %v441 = vand.u32 %v254, 2147483648
    %v442 = vsel %vm440, %v441, %v439
    %v443 = vrsqrt.pop %v257
    %v444 = vmul.f32 %v257, %v443
    %vm445 = vcmp.eq.f32.partialorder %v257, inf
    %v446 = vsel %vm445, %v257, %v444
    %vm447 = vcmp.eq.f32.partialorder %v257, 0.0
    %v448 = vand.u32 %v257, 2147483648
    %v449 = vsel %vm447, %v448, %v446
    %v450 = vrsqrt.pop %v260
    %v451 = vmul.f32 %v260, %v450
    %vm452 = vcmp.eq.f32.partialorder %v260, inf
    %v453 = vsel %vm452, %v260, %v451
    %vm454 = vcmp.eq.f32.partialorder %v260, 0.0
    %v455 = vand.u32 %v260, 2147483648
    %v456 = vsel %vm454, %v455, %v453
    %v457 = vrsqrt.pop %v263
    %v458 = vmul.f32 %v263, %v457
    %vm459 = vcmp.eq.f32.partialorder %v263, inf
    %v460 = vsel %vm459, %v263, %v458
    %vm461 = vcmp.eq.f32.partialorder %v263, 0.0
    %v462 = vand.u32 %v263, 2147483648
    %v463 = vsel %vm461, %v462, %v460
    %v464 = vrsqrt.pop %v266
    %v465 = vmul.f32 %v266, %v464
    %vm466 = vcmp.eq.f32.partialorder %v266, inf
    %v467 = vsel %vm466, %v266, %v465
    %vm468 = vcmp.eq.f32.partialorder %v266, 0.0
    %v469 = vand.u32 %v266, 2147483648
    %v470 = vsel %vm468, %v469, %v467
    %v471 = vrsqrt.pop %v269
    %v472 = vmul.f32 %v269, %v471
    %vm473 = vcmp.eq.f32.partialorder %v269, inf
    %v474 = vsel %vm473, %v269, %v472
    %vm475 = vcmp.eq.f32.partialorder %v269, 0.0
    %v476 = vand.u32 %v269, 2147483648
    %v477 = vsel %vm475, %v476, %v474
    %v478 = vrsqrt.pop %v272
    %v479 = vmul.f32 %v272, %v478
    %vm480 = vcmp.eq.f32.partialorder %v272, inf
    %v481 = vsel %vm480, %v272, %v479
    %vm482 = vcmp.eq.f32.partialorder %v272, 0.0
    %v483 = vand.u32 %v272, 2147483648
    %v484 = vsel %vm482, %v483, %v481
    %v485 = vrsqrt.pop %v275
    %v486 = vmul.f32 %v275, %v485
    %vm487 = vcmp.eq.f32.partialorder %v275, inf
    %v488 = vsel %vm487, %v275, %v486
    %vm489 = vcmp.eq.f32.partialorder %v275, 0.0
    %v490 = vand.u32 %v275, 2147483648
    %v491 = vsel %vm489, %v490, %v488
    %v492 = vrsqrt.pop %v278
    %v493 = vmul.f32 %v278, %v492
    %vm494 = vcmp.eq.f32.partialorder %v278, inf
    %v495 = vsel %vm494, %v278, %v493
    %vm496 = vcmp.eq.f32.partialorder %v278, 0.0
    %v497 = vand.u32 %v278, 2147483648
    %v498 = vsel %vm496, %v497, %v495
    %v499 = vrsqrt.pop %v281
    %v500 = vmul.f32 %v281, %v499
    %vm501 = vcmp.eq.f32.partialorder %v281, inf
    %v502 = vsel %vm501, %v281, %v500
    %vm503 = vcmp.eq.f32.partialorder %v281, 0.0
    %v504 = vand.u32 %v281, 2147483648
    %v505 = vsel %vm503, %v504, %v502
    %v506 = vadd.f32 %v288, 1e-09
    %v507 = vadd.f32 %v295, 1e-09
    %v508 = vadd.f32 %v302, 1e-09
    %v509 = vadd.f32 %v309, 1e-09
    %v510 = vadd.f32 %v316, 1e-09
    %v511 = vadd.f32 %v323, 1e-09
    %v512 = vadd.f32 %v330, 1e-09
    %v513 = vadd.f32 %v337, 1e-09
    %v514 = vadd.f32 %v344, 1e-09
    %v515 = vadd.f32 %v351, 1e-09
    %v516 = vadd.f32 %v358, 1e-09
    %v517 = vadd.f32 %v365, 1e-09
    %v518 = vadd.f32 %v372, 1e-09
    %v519 = vadd.f32 %v379, 1e-09
    %v520 = vadd.f32 %v386, 1e-09
    %v521 = vadd.f32 %v393, 1e-09
    %v522 = vadd.f32 %v400, 1e-09
    %v523 = vadd.f32 %v407, 1e-09
    %v524 = vadd.f32 %v414, 1e-09
    %v525 = vadd.f32 %v421, 1e-09
    %v526 = vadd.f32 %v428, 1e-09
    %v527 = vadd.f32 %v435, 1e-09
    %v528 = vadd.f32 %v442, 1e-09
    %v529 = vadd.f32 %v449, 1e-09
    %v530 = vadd.f32 %v456, 1e-09
    %v531 = vadd.f32 %v463, 1e-09
    %v532 = vadd.f32 %v470, 1e-09
    %v533 = vadd.f32 %v477, 1e-09
    %v534 = vadd.f32 %v484, 1e-09
    %v535 = vadd.f32 %v491, 1e-09
    %v536 = vadd.f32 %v498, 1e-09
    %v537 = vadd.f32 %v505, 1e-09
    %v538 = vrcp.pop %v506
    %v539 = vrcp.pop %v507
    %v540 = vrcp.pop %v508
    %v541 = vrcp.pop %v509
    %v542 = vrcp.pop %v510
    %v543 = vrcp.pop %v511
    %v544 = vrcp.pop %v512
    %v545 = vrcp.pop %v513
    %v546 = vrcp.pop %v514
    %v547 = vrcp.pop %v515
    %v548 = vrcp.pop %v516
    %v549 = vrcp.pop %v517
    %v550 = vrcp.pop %v518
    %v551 = vrcp.pop %v519
    %v552 = vrcp.pop %v520
    %v553 = vrcp.pop %v521
    %v554 = vrcp.pop %v522
    %v555 = vrcp.pop %v523
    %v556 = vrcp.pop %v524
    %v557 = vrcp.pop %v525
    %v558 = vrcp.pop %v526
    %v559 = vrcp.pop %v527
    %v560 = vrcp.pop %v528
    %v561 = vrcp.pop %v529
    %v562 = vrcp.pop %v530
    %v563 = vrcp.pop %v531
    %v564 = vrcp.pop %v532
    %v565 = vrcp.pop %v533
    %v566 = vrcp.pop %v534
    %v567 = vrcp.pop %v535
    %v568 = vrcp.pop %v536
    %v569 = vrcp.pop %v537
    %v570 = vmul.f32 %v122, %v538
    %v571 = vmul.f32 %v123, %v539
    %v572 = vmul.f32 %v124, %v540
    %v573 = vmul.f32 %v125, %v541
    %v574 = vmul.f32 %v126, %v542
    %v575 = vmul.f32 %v127, %v543
    %v576 = vmul.f32 %v128, %v544
    %v577 = vmul.f32 %v129, %v545
    %v578 = vmul.f32 %v130, %v546
    %v579 = vmul.f32 %v131, %v547
    %v580 = vmul.f32 %v132, %v548
    %v581 = vmul.f32 %v133, %v549
    %v582 = vmul.f32 %v134, %v550
    %v583 = vmul.f32 %v135, %v551
    %v584 = vmul.f32 %v136, %v552
    %v585 = vmul.f32 %v137, %v553
    %v586 = vmul.f32 %v138, %v554
    %v587 = vmul.f32 %v139, %v555
    %v588 = vmul.f32 %v140, %v556
    %v589 = vmul.f32 %v141, %v557
    %v590 = vmul.f32 %v142, %v558
    %v591 = vmul.f32 %v143, %v559
    %v592 = vmul.f32 %v144, %v560
    %v593 = vmul.f32 %v145, %v561
    %v594 = vmul.f32 %v146, %v562
    %v595 = vmul.f32 %v147, %v563
    %v596 = vmul.f32 %v148, %v564
    %v597 = vmul.f32 %v149, %v565
    %v598 = vmul.f32 %v150, %v566
    %v599 = vmul.f32 %v151, %v567
    %v600 = vmul.f32 %v152, %v568
    %v601 = vmul.f32 %v153, %v569
    %v603 = vsel %vm83, %v120, 0
    %v606 = vsel %vm83, %v570, 0
    %v609 = vsel %vm83, %v571, 0
    %v612 = vsel %vm83, %v572, 0
    %v615 = vsel %vm83, %v573, 0
    %v618 = vsel %vm83, %v574, 0
    %v621 = vsel %vm83, %v575, 0
    %v624 = vsel %vm83, %v576, 0
    %v627 = vsel %vm83, %v577, 0
    %v630 = vsel %vm83, %v578, 0
    %v633 = vsel %vm83, %v579, 0
    %v636 = vsel %vm83, %v580, 0
    %v639 = vsel %vm83, %v581, 0
    %v642 = vsel %vm83, %v582, 0
    %v645 = vsel %vm83, %v583, 0
    %v648 = vsel %vm83, %v584, 0
    %v651 = vsel %vm83, %v585, 0
    %653 = vmatprep.subr.mxu0 0.0
    %654 = vmatpush1.xpose.msra.mxu0 %v606
    %655 = vmatprep.subr.mxu0 0.0
    %656 = vmatpush1.xpose.msra.mxu0 %v609
    %657 = vmatprep.subr.mxu0 0.0
    %658 = vmatpush1.xpose.msra.mxu0 %v612
    %659 = vmatprep.subr.mxu0 0.0
    %660 = vmatpush1.xpose.msra.mxu0 %v615
    %661 = vmatprep.subr.mxu0 0.0
    %662 = vmatpush1.xpose.msra.mxu0 %v618
    %663 = vmatprep.subr.mxu0 0.0
    %664 = vmatpush1.xpose.msra.mxu0 %v621
    %665 = vmatprep.subr.mxu0 0.0
    %666 = vmatpush1.xpose.msra.mxu0 %v624
    %667 = vmatprep.subr.mxu0 0.0
    %668 = vmatpush1.xpose.msra.mxu0 %v627
    %669 = vmatprep.subr.mxu0 0.0
    %670 = vmatpush1.xpose.msra.mxu0 %v630
    %671 = vmatprep.subr.mxu0 0.0
    %672 = vmatpush1.xpose.msra.mxu0 %v633
    %673 = vmatprep.subr.mxu0 0.0
    %674 = vmatpush1.xpose.msra.mxu0 %v636
    %675 = vmatprep.subr.mxu0 0.0
    %676 = vmatpush1.xpose.msra.mxu0 %v639
    %677 = vmatprep.subr.mxu0 0.0
    %678 = vmatpush1.xpose.msra.mxu0 %v642
    %679 = vmatprep.subr.mxu0 0.0
    %680 = vmatpush1.xpose.msra.mxu0 %v645
    %681 = vmatprep.subr.mxu0 0.0
    %682 = vmatpush1.xpose.msra.mxu0 %v648
    %683 = vmatprep.subr.mxu0 0.0
    %684 = vmatpush1.xpose.msra.mxu0 %v651
    %685 = vmatprep.subr.mxu0 0.0
    %686 = vmatpush1.xpose.msra.mxu0 0.0
    %687 = vmatprep.subr.mxu0 0.0
    %688 = vmatpush1.xpose.msra.mxu0 0.0
    %689 = vmatprep.subr.mxu0 0.0
    %690 = vmatpush1.xpose.msra.mxu0 0.0
    %691 = vmatprep.subr.mxu0 0.0
    %692 = vmatpush1.xpose.msra.mxu0 0.0
    %693 = vmatprep.subr.mxu0 0.0
    %694 = vmatpush1.xpose.msra.mxu0 0.0
    %695 = vmatprep.subr.mxu0 0.0
    %696 = vmatpush1.xpose.msra.mxu0 0.0
    %697 = vmatprep.subr.mxu0 0.0
    %698 = vmatpush1.xpose.msra.mxu0 0.0
    %699 = vmatprep.subr.mxu0 0.0
    %700 = vmatpush1.xpose.msra.mxu0 0.0
    %701 = vmatprep.subr.mxu0 0.0
    %702 = vmatpush1.xpose.msra.mxu0 0.0
    %703 = vmatprep.subr.mxu0 0.0
    %704 = vmatpush1.xpose.msra.mxu0 0.0
    %705 = vmatprep.subr.mxu0 0.0
    %706 = vmatpush1.xpose.msra.mxu0 0.0
    %707 = vmatprep.subr.mxu0 0.0
    %708 = vmatpush1.xpose.msra.mxu0 0.0
    %709 = vmatprep.subr.mxu0 0.0
    %710 = vmatpush1.xpose.msra.mxu0 0.0
    %711 = vmatprep.subr.mxu0 0.0
    %712 = vmatpush1.xpose.msra.mxu0 0.0
    %713 = vmatprep.subr.mxu0 0.0
    %714 = vmatpush1.xpose.msra.mxu0 0.0
    %715 = vmatprep.subr.mxu0 0.0
    %716 = vmatpush1.xpose.msra.mxu0 0.0
    %717 = vmatprep.mubr.f32.mxu0 0.0
    %718 = vmatmul.mubr.f32.gmra.mrb[0].mxu0 %v603
    %v719 = vpop.f32.mrb[0].mxu0
    %v720 = vadd.f32 0.0, %v719
    %v721 = vpop.f32.mrb[0].mxu0
    %722 = vdwg.mxu0
    %v724 = vsel %vm83, %v121, 0
    %v727 = vsel %vm83, %v586, 0
    %v730 = vsel %vm83, %v587, 0
    %v733 = vsel %vm83, %v588, 0
    %v736 = vsel %vm83, %v589, 0
    %v739 = vsel %vm83, %v590, 0
    %v742 = vsel %vm83, %v591, 0
    %v745 = vsel %vm83, %v592, 0
    %v748 = vsel %vm83, %v593, 0
    %v751 = vsel %vm83, %v594, 0
    %v754 = vsel %vm83, %v595, 0
    %v757 = vsel %vm83, %v596, 0
    %v760 = vsel %vm83, %v597, 0
    %v763 = vsel %vm83, %v598, 0
    %v766 = vsel %vm83, %v599, 0
    %v769 = vsel %vm83, %v600, 0
    %v772 = vsel %vm83, %v601, 0
    %774 = vmatprep.subr.mxu0 0.0
    %775 = vmatpush1.xpose.msra.mxu0 %v727
    %776 = vmatprep.subr.mxu0 0.0
    %777 = vmatpush1.xpose.msra.mxu0 %v730
    %778 = vmatprep.subr.mxu0 0.0
    %779 = vmatpush1.xpose.msra.mxu0 %v733
    %780 = vmatprep.subr.mxu0 0.0
    %781 = vmatpush1.xpose.msra.mxu0 %v736
    %782 = vmatprep.subr.mxu0 0.0
    %783 = vmatpush1.xpose.msra.mxu0 %v739
    %784 = vmatprep.subr.mxu0 0.0
    %785 = vmatpush1.xpose.msra.mxu0 %v742
    %786 = vmatprep.subr.mxu0 0.0
    %787 = vmatpush1.xpose.msra.mxu0 %v745
    %788 = vmatprep.subr.mxu0 0.0
    %789 = vmatpush1.xpose.msra.mxu0 %v748
    %790 = vmatprep.subr.mxu0 0.0
    %791 = vmatpush1.xpose.msra.mxu0 %v751
    %792 = vmatprep.subr.mxu0 0.0
    %793 = vmatpush1.xpose.msra.mxu0 %v754
    %794 = vmatprep.subr.mxu0 0.0
    %795 = vmatpush1.xpose.msra.mxu0 %v757
    %796 = vmatprep.subr.mxu0 0.0
    %797 = vmatpush1.xpose.msra.mxu0 %v760
    %798 = vmatprep.subr.mxu0 0.0
    %799 = vmatpush1.xpose.msra.mxu0 %v763
    %800 = vmatprep.subr.mxu0 0.0
    %801 = vmatpush1.xpose.msra.mxu0 %v766
    %802 = vmatprep.subr.mxu0 0.0
    %803 = vmatpush1.xpose.msra.mxu0 %v769
    %804 = vmatprep.subr.mxu0 0.0
    %805 = vmatpush1.xpose.msra.mxu0 %v772
    %806 = vmatprep.subr.mxu0 0.0
    %807 = vmatpush1.xpose.msra.mxu0 0.0
    %808 = vmatprep.subr.mxu0 0.0
    %809 = vmatpush1.xpose.msra.mxu0 0.0
    %810 = vmatprep.subr.mxu0 0.0
    %811 = vmatpush1.xpose.msra.mxu0 0.0
    %812 = vmatprep.subr.mxu0 0.0
    %813 = vmatpush1.xpose.msra.mxu0 0.0
    %814 = vmatprep.subr.mxu0 0.0
    %815 = vmatpush1.xpose.msra.mxu0 0.0
    %816 = vmatprep.subr.mxu0 0.0
    %817 = vmatpush1.xpose.msra.mxu0 0.0
    %818 = vmatprep.subr.mxu0 0.0
    %819 = vmatpush1.xpose.msra.mxu0 0.0
    %820 = vmatprep.subr.mxu0 0.0
    %821 = vmatpush1.xpose.msra.mxu0 0.0
    %822 = vmatprep.subr.mxu0 0.0
    %823 = vmatpush1.xpose.msra.mxu0 0.0
    %824 = vmatprep.subr.mxu0 0.0
    %825 = vmatpush1.xpose.msra.mxu0 0.0
    %826 = vmatprep.subr.mxu0 0.0
    %827 = vmatpush1.xpose.msra.mxu0 0.0
    %828 = vmatprep.subr.mxu0 0.0
    %829 = vmatpush1.xpose.msra.mxu0 0.0
    %830 = vmatprep.subr.mxu0 0.0
    %831 = vmatpush1.xpose.msra.mxu0 0.0
    %832 = vmatprep.subr.mxu0 0.0
    %833 = vmatpush1.xpose.msra.mxu0 0.0
    %834 = vmatprep.subr.mxu0 0.0
    %835 = vmatpush1.xpose.msra.mxu0 0.0
    %836 = vmatprep.subr.mxu0 0.0
    %837 = vmatpush1.xpose.msra.mxu0 0.0
    %838 = vmatprep.mubr.f32.mxu0 0.0
    %839 = vmatmul.mubr.f32.gmra.mrb[0].mxu0 %v724
    %v840 = vpop.f32.mrb[0].mxu0
    %v841 = vadd.f32 0.0, %v840
    %v842 = vpop.f32.mrb[0].mxu0
    %843 = vdwg.mxu0
    %v846 = vlaneseq
    %v847 = vshrl.u32 %v846, 7
    %v848 = vsub.s32 0, %v847
    %v849 = vrot.slane %v32, %v848
    %v850 = vlaneseq
    %v851 = vshrl.u32 %v850, 7
    %v852 = vsub.s32 0, %v851
    %v853 = vrot.slane %v33, %v852
    %v856 = vmul.f32 %v720, %v849
    %v857 = vmul.f32 %v841, %v853
    %858 = vst [vmem:[#allocation2] sm:$0xff] %v856
    %859 = vst [vmem:[#allocation2 + $0x10] sm:$0xff] %v857
    // Predicated region
    $region18: #{tpu_custom_call.1} parent=1 // pred_check
      _
    $region19: #{tpu_custom_call.1} parent=1 // pred_check_branch
      %861 = sbr.rel (0) target = $region21
    $region20: #{tpu_custom_call.1} parent=1 // pred_region
      %s863 = ssub.s32 512, 512
      %864 = vsyncadd [#allocation3], %s863
      %s865 = sshll.u32 [#allocation2], 4
      %s866 = int_to_ptr.vmem [resolvable:$true] %s865
      %871 = dma.vmem_to_hbm [thread:$0]  %s866, 512, %s4, [#allocation3], 128, 128, 8
    $region21: #{tpu_custom_call.1} parent=1 // pred_fallthru
      _
    // Predicated region
    $region22: #{tpu_custom_call.1} parent=1 // pred_check
      _
    $region23: #{tpu_custom_call.1} parent=1 // pred_check_branch
      %873 = sbr.rel (0) target = $region25
    $region24: #{tpu_custom_call.1} parent=1 // pred_region
      %874 = dma.done [#allocation3], 512
    $region25: #{tpu_custom_call.1} parent=1 // pred_fallthru
      _
    %875 = vsyncpa [#allocation3], 1

</llo_original>
